<compile_context>
chip_gen: v7x
topology: tpu7x:2x2x1
jax: 0.10.0
libtpu: 0.0.40
codegen_flags: <defaults>
</compile_context>

<pallas_src>
import functools

import jax
import jax.numpy as jnp
import numpy as np
from jax import lax
from jax.experimental import pallas as pl
from jax.experimental.pallas import tpu as pltpu

_EPS = 1e-8  # matches F.cosine_similarity default eps


def _round_up(x, m):
    return (x + m - 1) // m * m


def _largest_aligned_divisor(n_pad, cap, step):
    """Largest multiple of `step` that divides n_pad and is <= cap (>= step)."""
    best = step
    for cand in range(step, min(cap, n_pad) + 1, step):
        if n_pad % cand == 0:
            best = cand
    return best


def _hinge_tile_kernel(rows_ref, cols_ref, pos_sim_ref, cls_rows_ref, cls_cols_ref,
                       out_ref, *, margin):
    j = pl.program_id(1)

    # Output block is resident across the inner (column) axis -> accumulator.
    @pl.when(j == 0)
    def _():
        out_ref[...] = jnp.zeros_like(out_ref)

    # neg_sim[i, jj] = cos(emb_i, emb_jj): pre-normalized bf16 operands, f32 acc (MXU).
    neg_sim = lax.dot_general(
        rows_ref[...], cols_ref[...], (((1,), (1,)), ((), ())),
        preferred_element_type=jnp.float32)                      # (BM, BN)

    cr = cls_rows_ref[...]                                       # (BM, 1) int32
    cc = cls_cols_ref[...]                                       # (1, BN) int32
    # Padded rows/cols carry class -1 and are excluded.
    mask = (cr != cc) & (cr >= 0) & (cc >= 0)

    # PyTorch: relu(margin - (pos_sim[None, :] - neg_sim)); pos_sim indexed by COLUMN.
    hinge = jnp.maximum(jnp.float32(margin) - pos_sim_ref[...] + neg_sim, 0.0)
    masked = jnp.where(mask, hinge, 0.0)

    # Collapse BM -> 8 with plain VALU adds over 8-row (sublane-tile) bands;
    # the remaining 8 -> 1 and cross-tile sum happen on the tiny output in XLA.
    bm = masked.shape[0]
    partial = masked[0:8, :]
    for r in range(1, bm // 8):
        partial = partial + masked[8 * r:8 * (r + 1), :]

    out_ref[...] += partial                                      # (8, BN)


def contrastive_embedding_hinge_loss(embeddings, pos_embeddings, embeddings_class,
                                     margin=0.1, block_m=512, block_n=256):
    """Scalar hinge loss, same semantics as the PyTorch module forward
    (eval mode, batch_soft_negatives=True, reduction='mean')."""
    n, d = embeddings.shape

    # ---- O(N*D) pre-pass in XLA: cosine-normalize once, cast to bf16 ----------
    e = embeddings.astype(jnp.float32)
    p = pos_embeddings.astype(jnp.float32)
    e_hat = e / jnp.maximum(jnp.linalg.norm(e, axis=-1, keepdims=True), _EPS)
    p_hat = p / jnp.maximum(jnp.linalg.norm(p, axis=-1, keepdims=True), _EPS)
    pos_sim = jnp.sum(e_hat * p_hat, axis=-1)                    # (N,), f32
    e_hat_bf16 = e_hat.astype(jnp.bfloat16)

    classes = embeddings_class.reshape(n).astype(jnp.int32)

    # ---- exact O(N log N) denominator: N^2 - sum_c count_c^2 ------------------
    # (den == 0, i.e. a single class, yields NaN/Inf just like PyTorch's mean
    #  over an empty masked selection.)
    sorted_c = jnp.sort(classes)
    new_run = jnp.concatenate(
        [jnp.ones((1,), jnp.int32), (sorted_c[1:] != sorted_c[:-1]).astype(jnp.int32)])
    run_id = jnp.cumsum(new_run) - 1
    counts = jax.ops.segment_sum(jnp.ones((n,), jnp.float32), run_id, num_segments=n)
    den = jnp.float32(n) * jnp.float32(n) - jnp.sum(counts * counts)

    # ---- tiling: decoupled row/column tiles, (8,128)-aligned -------------------
    n_pad = _round_up(n, 128)
    d_pad = _round_up(d, 128)
    bn = _largest_aligned_divisor(n_pad, block_n, 128)           # column tile (MXU N dim)
    # Cap the row tile so there are >= 2 row tiles -> the "parallel" row axis
    # keeps both v7x TensorCores busy.
    bm_cap = min(block_m, max(8, n_pad // 2))
    bm = _largest_aligned_divisor(n_pad, bm_cap, 8)              # row tile

    # Pad: feature dim with zeros (dot invariant), batch dim with zero rows
    # (class -1 -> excluded by the mask).
    if n_pad != n or d_pad != d:
        e_hat_bf16 = jnp.pad(e_hat_bf16, ((0, n_pad - n), (0, d_pad - d)))
    classes_shifted = classes - jnp.min(classes)                 # real classes >= 0
    if n_pad != n:
        classes_shifted = jnp.pad(classes_shifted, (0, n_pad - n), constant_values=-1)
        pos_sim = jnp.pad(pos_sim, (0, n_pad - n))
    cls_rows = classes_shifted.reshape(n_pad, 1)
    cls_cols = classes_shifted.reshape(1, n_pad)
    pos_sim_row = pos_sim.reshape(1, n_pad)

    n_row_tiles = n_pad // bm
    n_col_tiles = n_pad // bn

    # Only raise the scoped-VMEM limit when the double-buffered blocks need it
    # (cap at 48 MiB to leave headroom under v7x's 64 MiB physical VMEM).
    step_bytes = 2 * ((bm + bn) * d_pad * 2 + (bm + 2 * bn) * 4) + 8 * bn * 4
    vmem_limit = None
    if step_bytes > 12 * 1024 * 1024:
        vmem_limit = int(min(48 * 1024 * 1024, 2 * step_bytes))

    kernel = functools.partial(_hinge_tile_kernel, margin=float(margin))
    partials = pl.pallas_call(
        kernel,
        out_shape=jax.ShapeDtypeStruct((n_row_tiles * 8, bn), jnp.float32),
        grid_spec=pltpu.PrefetchScalarGridSpec(
            num_scalar_prefetch=0,
            grid=(n_row_tiles, n_col_tiles),
            in_specs=[
                pl.BlockSpec((bm, d_pad), lambda i, j: (i, 0)),   # anchor rows (bf16, normalized)
                pl.BlockSpec((bn, d_pad), lambda i, j: (j, 0)),   # soft-neg cols (bf16, normalized)
                pl.BlockSpec((1, bn), lambda i, j: (0, j)),       # pos_sim per column (f32)
                pl.BlockSpec((bm, 1), lambda i, j: (i, 0)),       # row classes
                pl.BlockSpec((1, bn), lambda i, j: (0, j)),       # col classes
            ],
            out_specs=pl.BlockSpec((8, bn), lambda i, j: (i, 0)),
        ),
        compiler_params=pltpu.CompilerParams(
            dimension_semantics=("parallel", "arbitrary"),
            vmem_limit_bytes=vmem_limit),
    )(e_hat_bf16, e_hat_bf16, pos_sim_row, cls_rows, cls_cols)

    return jnp.sum(partials) / den


def _reference_loss(embeddings, pos_embeddings, embeddings_class, margin=0.1,
                    mxu_dtype=jnp.float32):
    """Pure-JAX reference mirroring the PyTorch formula literally.
    mxu_dtype=bfloat16 mirrors the kernel's bf16 MXU operands for a tight check."""
    e = embeddings.astype(jnp.float32)
    p = pos_embeddings.astype(jnp.float32)
    e_hat = e / jnp.maximum(jnp.linalg.norm(e, axis=-1, keepdims=True), _EPS)
    p_hat = p / jnp.maximum(jnp.linalg.norm(p, axis=-1, keepdims=True), _EPS)
    pos_sim = jnp.sum(e_hat * p_hat, axis=-1)                    # (N,)
    eh = e_hat.astype(mxu_dtype)
    neg_sim = jnp.dot(eh, eh.T, preferred_element_type=jnp.float32)
    mask = embeddings_class[:, None] != embeddings_class[None, :]
    hinge = jnp.maximum(margin - (pos_sim[None, :] - neg_sim), 0.0)
    return jnp.sum(jnp.where(mask, hinge, 0.0)) / jnp.sum(mask)


# TODO(synk): training-mode covariance/spectral_norm regularization branch and
# the return_soft_negatives extras are not implemented (default eval path only).

if __name__ == "__main__":
    key = jax.random.PRNGKey(0)
    k1, k2, k3, k4, k5, k6 = jax.random.split(key, 6)

    # Case 1: N=256, D=256 — default tiles (bm=128, bn=256 -> 2x1 grid, megacore split).
    n1, d1 = 256, 256
    emb1 = jax.random.normal(k1, (n1, d1), dtype=jnp.float32)
    pos1 = jax.random.normal(k2, (n1, d1), dtype=jnp.float32)
    cls1 = jax.random.randint(k3, (n1,), 0, 4, dtype=jnp.int32)

    loss1 = jax.block_until_ready(
        contrastive_embedding_hinge_loss(emb1, pos1, cls1, 0.1))
    ref1_bf16 = _reference_loss(emb1, pos1, cls1, 0.1, mxu_dtype=jnp.bfloat16)
    ref1_f32 = _reference_loss(emb1, pos1, cls1, 0.1, mxu_dtype=jnp.float32)
    np.testing.assert_allclose(np.asarray(loss1), np.asarray(ref1_bf16),
                               rtol=1e-3, atol=1e-5)
    np.testing.assert_allclose(np.asarray(loss1), np.asarray(ref1_f32),
                               rtol=5e-2, atol=5e-3)

    # Case 1b: force a 4x2 grid to exercise the column-axis accumulation path.
    loss1b = jax.block_until_ready(
        contrastive_embedding_hinge_loss(emb1, pos1, cls1, 0.1,
                                         block_m=64, block_n=128))
    np.testing.assert_allclose(np.asarray(loss1b), np.asarray(ref1_bf16),
                               rtol=1e-3, atol=1e-5)

    # Case 2: small ragged shapes (exercise N/D padding, masked padded rows/cols).
    n2, d2 = 20, 40
    emb2 = jax.random.normal(k4, (n2, d2), dtype=jnp.float32)
    pos2 = jax.random.normal(k5, (n2, d2), dtype=jnp.float32)
    cls2 = jax.random.randint(k6, (n2,), 0, 3, dtype=jnp.int32)

    loss2 = jax.block_until_ready(
        contrastive_embedding_hinge_loss(emb2, pos2, cls2, 0.1))
    ref2_bf16 = _reference_loss(emb2, pos2, cls2, 0.1, mxu_dtype=jnp.bfloat16)
    ref2_f32 = _reference_loss(emb2, pos2, cls2, 0.1, mxu_dtype=jnp.float32)
    np.testing.assert_allclose(np.asarray(loss2), np.asarray(ref2_bf16),
                               rtol=1e-3, atol=1e-5)
    np.testing.assert_allclose(np.asarray(loss2), np.asarray(ref2_f32),
                               rtol=5e-2, atol=5e-3)

    print("KERNEL_OK")
</pallas_src>

<mosaic_0001>
module attributes {stable_mosaic.version = 11 : i64} {
  func.func @_hinge_tile_kernel(%arg0: i32, %arg1: i32, %arg2: memref<128x256xbf16, #tpu.memory_space<vmem>>, %arg3: memref<256x256xbf16, #tpu.memory_space<vmem>>, %arg4: memref<1x256xf32, #tpu.memory_space<vmem>>, %arg5: memref<128x1xi32, #tpu.memory_space<vmem>>, %arg6: memref<1x256xi32, #tpu.memory_space<vmem>>, %arg7: memref<8x256xf32, #tpu.memory_space<vmem>>) attributes {dimension_semantics = [#tpu.dimension_semantics<parallel>, #tpu.dimension_semantics<arbitrary>], iteration_bounds = array<i64: 2, 1>, scalar_prefetch = 0 : i64, scratch_operands = 0 : i64, tpu.core_type = #tpu.core_type<tc>, window_params = [{transform_indices = @transform_0, window_bounds = array<i64: 128, 256>}, {transform_indices = @transform_1, window_bounds = array<i64: 256, 256>}, {transform_indices = @transform_2, window_bounds = array<i64: 1, 256>}, {transform_indices = @transform_3, window_bounds = array<i64: 128, 1>}, {transform_indices = @transform_4, window_bounds = array<i64: 1, 256>}, {transform_indices = @transform_5, window_bounds = array<i64: 8, 256>}]} {
    %c0_i32 = arith.constant 0 : i32
    %0 = arith.cmpi eq, %arg1, %c0_i32 : i32
    %1 = arith.extui %0 : i1 to i32
    %c0_i32_0 = arith.constant 0 : i32
    %2 = arith.cmpi ne, %1, %c0_i32_0 : i32
    scf.if %2 {
      %cst_19 = arith.constant 0.000000e+00 : f32
      %62 = vector.broadcast %cst_19 : f32 to vector<8x256xf32>
      %c0_20 = arith.constant 0 : index
      %c0_21 = arith.constant 0 : index
      %63 = vector.load %arg7[%c0_20, %c0_21] : memref<8x256xf32, #tpu.memory_space<vmem>>, vector<8x256xf32>
      tpu.vector_store %arg7[%c0_20, %c0_21], %62 {strides = array<i32>} : memref<8x256xf32, #tpu.memory_space<vmem>>, vector<8x256xf32>,
    } else {
    }
    %c0 = arith.constant 0 : index
    %c0_1 = arith.constant 0 : index
    %3 = vector.load %arg2[%c0, %c0_1] : memref<128x256xbf16, #tpu.memory_space<vmem>>, vector<128x256xbf16>
    %c0_2 = arith.constant 0 : index
    %c0_3 = arith.constant 0 : index
    %4 = vector.load %arg3[%c0_2, %c0_3] : memref<256x256xbf16, #tpu.memory_space<vmem>>, vector<256x256xbf16>
    %cst = arith.constant dense<0.000000e+00> : vector<128x256xf32>
    %5 = tpu.matmul %3, %4, %cst {dimension_numbers = #tpu.dot_dimension_numbers<[1], [1], [0], [0], [0, 0, 1, 0], [], []>} : vector<128x256xbf16>, vector<256x256xbf16>, vector<128x256xf32> -> vector<128x256xf32>
    %c0_4 = arith.constant 0 : index
    %c0_5 = arith.constant 0 : index
    %6 = vector.load %arg5[%c0_4, %c0_5] : memref<128x1xi32, #tpu.memory_space<vmem>>, vector<128x1xi32>
    %c0_6 = arith.constant 0 : index
    %c0_7 = arith.constant 0 : index
    %7 = vector.load %arg6[%c0_6, %c0_7] : memref<1x256xi32, #tpu.memory_space<vmem>>, vector<1x256xi32>
    %8 = vector.broadcast %6 : vector<128x1xi32> to vector<128x256xi32>
    %9 = vector.broadcast %7 : vector<1x256xi32> to vector<128x256xi32>
    %10 = arith.cmpi ne, %8, %9 : vector<128x256xi32>
    %c0_i32_8 = arith.constant 0 : i32
    %11 = vector.broadcast %c0_i32_8 : i32 to vector<128x1xi32>
    %12 = arith.cmpi sge, %6, %11 : vector<128x1xi32>
    %13 = vector.broadcast %12 : vector<128x1xi1> to vector<128x256xi1>
    %14 = arith.andi %10, %13 : vector<128x256xi1>
    %c0_i32_9 = arith.constant 0 : i32
    %15 = vector.broadcast %c0_i32_9 : i32 to vector<1x256xi32>
    %16 = arith.cmpi sge, %7, %15 : vector<1x256xi32>
    %17 = vector.broadcast %16 : vector<1x256xi1> to vector<128x256xi1>
    %18 = arith.andi %14, %17 : vector<128x256xi1>
    %c0_10 = arith.constant 0 : index
    %c0_11 = arith.constant 0 : index
    %19 = vector.load %arg4[%c0_10, %c0_11] : memref<1x256xf32, #tpu.memory_space<vmem>>, vector<1x256xf32>
    %cst_12 = arith.constant 1.000000e-01 : f32
    %20 = vector.broadcast %cst_12 : f32 to vector<1x256xf32>
    %21 = arith.subf %20, %19 : vector<1x256xf32>
    %22 = vector.broadcast %21 : vector<1x256xf32> to vector<128x256xf32>
    %23 = arith.addf %22, %5 : vector<128x256xf32>
    %cst_13 = arith.constant 0.000000e+00 : f32
    %24 = vector.broadcast %cst_13 : f32 to vector<128x256xf32>
    %25 = arith.maximumf %23, %24 : vector<128x256xf32>
    %cst_14 = arith.constant 0.000000e+00 : f32
    %26 = vector.broadcast %cst_14 : f32 to vector<128x256xf32>
    %27 = arith.select %18, %25, %26 : vector<128x256xi1>, vector<128x256xf32>
    %28 = vector.extract_strided_slice %27 {offsets = [0, 0], sizes = [8, 256], strides = [1, 1]} : vector<128x256xf32> to vector<8x256xf32>
    %29 = vector.extract_strided_slice %27 {offsets = [8, 0], sizes = [8, 256], strides = [1, 1]} : vector<128x256xf32> to vector<8x256xf32>
    %30 = arith.addf %28, %29 : vector<8x256xf32>
    %31 = vector.extract_strided_slice %27 {offsets = [16, 0], sizes = [8, 256], strides = [1, 1]} : vector<128x256xf32> to vector<8x256xf32>
    %32 = arith.addf %30, %31 : vector<8x256xf32>
    %33 = vector.extract_strided_slice %27 {offsets = [24, 0], sizes = [8, 256], strides = [1, 1]} : vector<128x256xf32> to vector<8x256xf32>
    %34 = arith.addf %32, %33 : vector<8x256xf32>
    %35 = vector.extract_strided_slice %27 {offsets = [32, 0], sizes = [8, 256], strides = [1, 1]} : vector<128x256xf32> to vector<8x256xf32>
    %36 = arith.addf %34, %35 : vector<8x256xf32>
    %37 = vector.extract_strided_slice %27 {offsets = [40, 0], sizes = [8, 256], strides = [1, 1]} : vector<128x256xf32> to vector<8x256xf32>
    %38 = arith.addf %36, %37 : vector<8x256xf32>
    %39 = vector.extract_strided_slice %27 {offsets = [48, 0], sizes = [8, 256], strides = [1, 1]} : vector<128x256xf32> to vector<8x256xf32>
    %40 = arith.addf %38, %39 : vector<8x256xf32>
    %41 = vector.extract_strided_slice %27 {offsets = [56, 0], sizes = [8, 256], strides = [1, 1]} : vector<128x256xf32> to vector<8x256xf32>
    %42 = arith.addf %40, %41 : vector<8x256xf32>
    %43 = vector.extract_strided_slice %27 {offsets = [64, 0], sizes = [8, 256], strides = [1, 1]} : vector<128x256xf32> to vector<8x256xf32>
    %44 = arith.addf %42, %43 : vector<8x256xf32>
    %45 = vector.extract_strided_slice %27 {offsets = [72, 0], sizes = [8, 256], strides = [1, 1]} : vector<128x256xf32> to vector<8x256xf32>
    %46 = arith.addf %44, %45 : vector<8x256xf32>
    %47 = vector.extract_strided_slice %27 {offsets = [80, 0], sizes = [8, 256], strides = [1, 1]} : vector<128x256xf32> to vector<8x256xf32>
    %48 = arith.addf %46, %47 : vector<8x256xf32>
    %49 = vector.extract_strided_slice %27 {offsets = [88, 0], sizes = [8, 256], strides = [1, 1]} : vector<128x256xf32> to vector<8x256xf32>
    %50 = arith.addf %48, %49 : vector<8x256xf32>
    %51 = vector.extract_strided_slice %27 {offsets = [96, 0], sizes = [8, 256], strides = [1, 1]} : vector<128x256xf32> to vector<8x256xf32>
    %52 = arith.addf %50, %51 : vector<8x256xf32>
    %53 = vector.extract_strided_slice %27 {offsets = [104, 0], sizes = [8, 256], strides = [1, 1]} : vector<128x256xf32> to vector<8x256xf32>
    %54 = arith.addf %52, %53 : vector<8x256xf32>
    %55 = vector.extract_strided_slice %27 {offsets = [112, 0], sizes = [8, 256], strides = [1, 1]} : vector<128x256xf32> to vector<8x256xf32>
    %56 = arith.addf %54, %55 : vector<8x256xf32>
    %57 = vector.extract_strided_slice %27 {offsets = [120, 0], sizes = [8, 256], strides = [1, 1]} : vector<128x256xf32> to vector<8x256xf32>
    %58 = arith.addf %56, %57 : vector<8x256xf32>
    %c0_15 = arith.constant 0 : index
    %c0_16 = arith.constant 0 : index
    %59 = vector.load %arg7[%c0_15, %c0_16] : memref<8x256xf32, #tpu.memory_space<vmem>>, vector<8x256xf32>
    %60 = arith.addf %59, %58 : vector<8x256xf32>
    %c0_17 = arith.constant 0 : index
    %c0_18 = arith.constant 0 : index
    %61 = vector.load %arg7[%c0_17, %c0_18] : memref<8x256xf32, #tpu.memory_space<vmem>>, vector<8x256xf32>
    tpu.vector_store %arg7[%c0_17, %c0_18], %60 {strides = array<i32>} : memref<8x256xf32, #tpu.memory_space<vmem>>, vector<8x256xf32>,
    return
  }
  func.func @transform_0(%arg0: i32, %arg1: i32) -> (i32, i32) {
    %c0_i32 = arith.constant 0 : i32
    %c0_i32_0 = arith.constant 0 : i32
    return %arg0, %c0_i32 : i32, i32
  }
  func.func @transform_1(%arg0: i32, %arg1: i32) -> (i32, i32) {
    %c0_i32 = arith.constant 0 : i32
    %c0_i32_0 = arith.constant 0 : i32
    return %arg1, %c0_i32 : i32, i32
  }
  func.func @transform_2(%arg0: i32, %arg1: i32) -> (i32, i32) {
    %c0_i32 = arith.constant 0 : i32
    %c0_i32_0 = arith.constant 0 : i32
    return %c0_i32, %arg1 : i32, i32
  }
  func.func @transform_3(%arg0: i32, %arg1: i32) -> (i32, i32) {
    %c0_i32 = arith.constant 0 : i32
    %c0_i32_0 = arith.constant 0 : i32
    return %arg0, %c0_i32 : i32, i32
  }
  func.func @transform_4(%arg0: i32, %arg1: i32) -> (i32, i32) {
    %c0_i32 = arith.constant 0 : i32
    %c0_i32_0 = arith.constant 0 : i32
    return %c0_i32, %arg1 : i32, i32
  }
  func.func @transform_5(%arg0: i32, %arg1: i32) -> (i32, i32) {
    %c0_i32 = arith.constant 0 : i32
    %c0_i32_0 = arith.constant 0 : i32
    return %arg0, %c0_i32 : i32, i32
  }
}

</mosaic_0001>

<llo_original>
// kernel: tpu_custom_call.1
$region0: #{tpu_custom_call.1}
  #allocation0 [shape = 'u32[]', space=smem, size = 0x4, offset = 0x4, fixed_abs, tag = 'smem constant byte address 0x4 - core index']
  #allocation1 [shape = 'u32[144,128]{1,0:T(1,128)}', space=vmem, size = 0x12000, scoped, tag = 'internal scratch']
  %s0 = inlined_call_operand.vmem [shape: bf16[256,256], index: 0, kind: input, shape index: {}]
  %s1 = inlined_call_operand.hbm [shape: bf16[256,256], index: 1, kind: input, shape index: {}]
  %s2 = inlined_call_operand.vmem [shape: f32[1,256], index: 2, kind: input, shape index: {}]
  %s3 = inlined_call_operand.vmem [shape: s32[256,1], index: 3, kind: input, shape index: {}]
  %s4 = inlined_call_operand.vmem [shape: s32[1,256], index: 4, kind: input, shape index: {}]
  %s5 = inlined_call_operand.hbm [shape: f32[16,256], index: 5, kind: output, shape index: {}]
  %s6 = sld [smem:[#allocation0]]
  $region61: #{tpu_custom_call.1} parent=0
    _
  %s8 = ssub.s32 1, %s6
  %s9 = scalar_select 0, %s8, %s6
  $region1: #{tpu_custom_call.1} parent=0
    #allocation2 [shape = 'u8[131072]{0}', space=vmem, size = 0x20000, scoped, tag = 'input window, operand 1, single buffered']
    #allocation3 [shape = 's32[2]{0}', space=sflag, size = 0x8, scoped, tag = 'scoped memory for tpu_custom_call.1']
    #allocation4 [shape = 's32[2]{0}', space=sflag, size = 0x8, scoped, tag = 'scoped memory for tpu_custom_call.1']
    #allocation5 [shape = 'u8[16384]{0}', space=vmem, size = 0x4000, scoped, tag = 'output window, operand 0']
    %10 = vsyncpa [#allocation3], 0
    %11 = vsyncpa [#allocation4], 0
    %s12 = scalar_lea.sflag [#allocation4], 1
    %13 = vsyncpa %s12, 0
    loop: start=0, step=1, limit=4
    $region2: #{tpu_custom_call.1} parent=1 // loop_pre_header
      _
    $region3: #{tpu_custom_call.1} parent=1 // loop_header
      %s15 = sphi 0, %s19
      %p16 = scmp.ge.s32.totalorder %s15, 4
      %s22 = sphi 0, %s34
      %s23 = sphi 0, %s30
      %s24 = sphi 0, %s22
      %s25 = sphi 0, %s23
      %s26 = sphi 0, %s24
      %s27 = sphi 0, %s25
      %s37 = sphi 0, %s39
      %s40 = sphi 0, %s37
      %s41 = sphi 0, %s40
      %s57 = sphi 0, %s41
      %s63 = sphi 0, %s65
      %s66 = sphi 0, %s63
      %s67 = sphi 0, %s66
      %s83 = sphi 0, %s67
      %s89 = sphi 0, %s91
      %s92 = sphi 0, %s89
      %s93 = sphi 0, %s92
      %s109 = sphi 0, %s93
      %s115 = sphi 0, %s117
      %s118 = sphi 0, %s115
      %s119 = sphi 0, %s118
      %s135 = sphi 0, %s119
      %s141 = sphi 0, %s143
      %s144 = sphi 0, %s141
      %s145 = sphi 0, %s144
      %s161 = sphi 0, %s145
      %s167 = sphi 0, %s169
      %s170 = sphi 0, %s167
      %s171 = sphi 0, %s170
      %s187 = sphi 0, %s171
    $region4: #{tpu_custom_call.1} parent=1 // loop_header_branch
      %18 = sbr.rel (%p16) target = $region8
    $region5: #{tpu_custom_call.1} parent=1 // loop_body
      %s20 = ssub.s32 %s15, 1
      %s21 = ssub.s32 %s15, 2
      %s28 = sadd.s32 1, %s23
      %p29 = scmp.ge.s32.totalorder %s28, 1
      %s30 = scalar_select %p29, 0, %s28
      %s31 = sadd.s32 1, %s22
      %s32 = scalar_select %p29, %s31, %s22
      %p33 = scmp.ge.s32.totalorder %s32, 2
      %s34 = scalar_select %p33, 0, %s32
      %s35 = ssub.s32 %s22, %s34
      %p36 = scmp.eq.s32.totalorder %s35, 0
      %s38 = sadd.s32 %s37, 1
      %s39 = scalar_select %p36, %s37, %s38
      %p42 = pneg %p36
      %p43 = scmp.eq.s32.totalorder %s15, 1
      %p44 = por %p42, %p43
      %p45 = scmp.ne.s32.totalorder %s37, %s40
      %p46 = scmp.eq.s32.totalorder %s15, 0
      %p47 = por %p45, %p46
      %p48 = scmp.ne.s32.totalorder %s37, %s40
      %p49 = scmp.eq.s32.totalorder %s20, 1
      %p50 = por %p48, %p49
      %p51 = scmp.ne.s32.totalorder %s40, %s41
      %p52 = scmp.eq.s32.totalorder %s20, 0
      %p53 = por %p51, %p52
      %p54 = scmp.ne.s32.totalorder %s40, %s41
      %p55 = scmp.eq.s32.totalorder %s21, 1
      %p56 = por %p54, %p55
      %p58 = scmp.ne.s32.totalorder %s41, %s57
      %p59 = scmp.eq.s32.totalorder %s21, 0
      %p60 = por %p58, %p59
      %s61 = ssub.s32 %s23, %s30
      %p62 = scmp.eq.s32.totalorder %s61, 0
      %s64 = sadd.s32 %s63, 1
      %s65 = scalar_select %p62, %s63, %s64
      %p68 = pneg %p62
      %p69 = scmp.eq.s32.totalorder %s15, 1
      %p70 = por %p68, %p69
      %p71 = scmp.ne.s32.totalorder %s63, %s66
      %p72 = scmp.eq.s32.totalorder %s15, 0
      %p73 = por %p71, %p72
      %p74 = scmp.ne.s32.totalorder %s63, %s66
      %p75 = scmp.eq.s32.totalorder %s20, 1
      %p76 = por %p74, %p75
      %p77 = scmp.ne.s32.totalorder %s66, %s67
      %p78 = scmp.eq.s32.totalorder %s20, 0
      %p79 = por %p77, %p78
      %p80 = scmp.ne.s32.totalorder %s66, %s67
      %p81 = scmp.eq.s32.totalorder %s21, 1
      %p82 = por %p80, %p81
      %p84 = scmp.ne.s32.totalorder %s67, %s83
      %p85 = scmp.eq.s32.totalorder %s21, 0
      %p86 = por %p84, %p85
      %s87 = ssub.s32 %s23, %s30
      %p88 = scmp.eq.s32.totalorder %s87, 0
      %s90 = sadd.s32 %s89, 1
      %s91 = scalar_select %p88, %s89, %s90
      %p94 = pneg %p88
      %p95 = scmp.eq.s32.totalorder %s15, 1
      %p96 = por %p94, %p95
      %p97 = scmp.ne.s32.totalorder %s89, %s92
      %p98 = scmp.eq.s32.totalorder %s15, 0
      %p99 = por %p97, %p98
      %p100 = scmp.ne.s32.totalorder %s89, %s92
      %p101 = scmp.eq.s32.totalorder %s20, 1
      %p102 = por %p100, %p101
      %p103 = scmp.ne.s32.totalorder %s92, %s93
      %p104 = scmp.eq.s32.totalorder %s20, 0
      %p105 = por %p103, %p104
      %p106 = scmp.ne.s32.totalorder %s92, %s93
      %p107 = scmp.eq.s32.totalorder %s21, 1
      %p108 = por %p106, %p107
      %p110 = scmp.ne.s32.totalorder %s93, %s109
      %p111 = scmp.eq.s32.totalorder %s21, 0
      %p112 = por %p110, %p111
      %s113 = ssub.s32 %s22, %s34
      %p114 = scmp.eq.s32.totalorder %s113, 0
      %s116 = sadd.s32 %s115, 1
      %s117 = scalar_select %p114, %s115, %s116
      %p120 = pneg %p114
      %p121 = scmp.eq.s32.totalorder %s15, 1
      %p122 = por %p120, %p121
      %p123 = scmp.ne.s32.totalorder %s115, %s118
      %p124 = scmp.eq.s32.totalorder %s15, 0
      %p125 = por %p123, %p124
      %p126 = scmp.ne.s32.totalorder %s115, %s118
      %p127 = scmp.eq.s32.totalorder %s20, 1
      %p128 = por %p126, %p127
      %p129 = scmp.ne.s32.totalorder %s118, %s119
      %p130 = scmp.eq.s32.totalorder %s20, 0
      %p131 = por %p129, %p130
      %p132 = scmp.ne.s32.totalorder %s118, %s119
      %p133 = scmp.eq.s32.totalorder %s21, 1
      %p134 = por %p132, %p133
      %p136 = scmp.ne.s32.totalorder %s119, %s135
      %p137 = scmp.eq.s32.totalorder %s21, 0
      %p138 = por %p136, %p137
      %s139 = ssub.s32 %s23, %s30
      %p140 = scmp.eq.s32.totalorder %s139, 0
      %s142 = sadd.s32 %s141, 1
      %s143 = scalar_select %p140, %s141, %s142
      %p146 = pneg %p140
      %p147 = scmp.eq.s32.totalorder %s15, 1
      %p148 = por %p146, %p147
      %p149 = scmp.ne.s32.totalorder %s141, %s144
      %p150 = scmp.eq.s32.totalorder %s15, 0
      %p151 = por %p149, %p150
      %p152 = scmp.ne.s32.totalorder %s141, %s144
      %p153 = scmp.eq.s32.totalorder %s20, 1
      %p154 = por %p152, %p153
      %p155 = scmp.ne.s32.totalorder %s144, %s145
      %p156 = scmp.eq.s32.totalorder %s20, 0
      %p157 = por %p155, %p156
      %p158 = scmp.ne.s32.totalorder %s144, %s145
      %p159 = scmp.eq.s32.totalorder %s21, 1
      %p160 = por %p158, %p159
      %p162 = scmp.ne.s32.totalorder %s145, %s161
      %p163 = scmp.eq.s32.totalorder %s21, 0
      %p164 = por %p162, %p163
      %s165 = ssub.s32 %s22, %s34
      %p166 = scmp.eq.s32.totalorder %s165, 0
      %s168 = sadd.s32 %s167, 1
      %s169 = scalar_select %p166, %s167, %s168
      %p172 = pneg %p166
      %p173 = scmp.eq.s32.totalorder %s15, 1
      %p174 = por %p172, %p173
      %p175 = scmp.ne.s32.totalorder %s167, %s170
      %p176 = scmp.eq.s32.totalorder %s15, 0
      %p177 = por %p175, %p176
      %p178 = scmp.ne.s32.totalorder %s167, %s170
      %p179 = scmp.eq.s32.totalorder %s20, 1
      %p180 = por %p178, %p179
      %p181 = scmp.ne.s32.totalorder %s170, %s171
      %p182 = scmp.eq.s32.totalorder %s20, 0
      %p183 = por %p181, %p182
      %p184 = scmp.ne.s32.totalorder %s170, %s171
      %p185 = scmp.eq.s32.totalorder %s21, 1
      %p186 = por %p184, %p185
      %p188 = scmp.ne.s32.totalorder %s171, %s187
      %p189 = scmp.eq.s32.totalorder %s21, 0
      %p190 = por %p188, %p189
      %p191 = scmp.le.s32.totalorder 1, %s15
      %p192 = scmp.lt.s32.totalorder %s15, 3
      %p193 = pnand %p191, %p192
      %p194 = pneg %p193
      // Predicated region
      $region9: #{tpu_custom_call.1} parent=5 // pred_check
        _
      $region10: #{tpu_custom_call.1} parent=5 // pred_check_branch
        %196 = sbr.rel (%p193) target = $region12
      $region11: #{tpu_custom_call.1} parent=5 // pred_region
        %s197 = ssub.s32 %s15, 1
        // Predicated region
        $region13: #{tpu_custom_call.1} parent=11 // pred_check
          %p198 = pneg %p79
        $region14: #{tpu_custom_call.1} parent=11 // pred_check_branch
          %200 = sbr.rel (%p198) target = $region16
        $region15: #{tpu_custom_call.1} parent=11 // pred_region
          %s201 = smul.u32 32, %s25
          %s203 = ssub.s32 4096, 4096
          %204 = vsyncadd [#allocation3], %s203
          %s205 = smul.addr %s201, 2
          %s206 = smul.addr %s205, 64
          %s207 = scalar_lea.hbm %s1, %s206
          %s208 = sshll.u32 [#allocation2], 4
          %s209 = int_to_ptr.vmem [resolvable:$true] %s208
          %214 = dma.hbm_to_vmem [thread:$0]  %s207, 4096, %s209, [#allocation3], 128, 128, 8
        $region16: #{tpu_custom_call.1} parent=11 // pred_fallthru
          _
        // Predicated region
        $region17: #{tpu_custom_call.1} parent=11 // pred_check
          %p215 = pneg %p105
        $region18: #{tpu_custom_call.1} parent=11 // pred_check_branch
          %217 = sbr.rel (%p215) target = $region20
        $region19: #{tpu_custom_call.1} parent=11 // pred_region
          %s218 = smul.u32 2, %s25
          %p219 = scmp.lt.s32.totalorder %s218, 1
          %s220 = scalar_select %p219, %s218, 1
          %s221 = scalar_lea.vmem %s2, %s220
          %s222 = smul.u32 2, %s25
        $region20: #{tpu_custom_call.1} parent=11 // pred_fallthru
          _
        // Predicated region
        $region21: #{tpu_custom_call.1} parent=11 // pred_check
          %p223 = pneg %p157
        $region22: #{tpu_custom_call.1} parent=11 // pred_check_branch
          %225 = sbr.rel (%p223) target = $region24
        $region23: #{tpu_custom_call.1} parent=11 // pred_region
          %s226 = smul.u32 2, %s25
          %p227 = scmp.lt.s32.totalorder %s226, 1
          %s228 = scalar_select %p227, %s226, 1
          %s229 = scalar_lea.vmem %s4, %s228
          %s230 = smul.u32 2, %s25
        $region24: #{tpu_custom_call.1} parent=11 // pred_fallthru
          _
      $region12: #{tpu_custom_call.1} parent=5 // pred_fallthru
        _
      %p231 = scmp.lt.s32.totalorder %s15, 2
      // Predicated region
      $region25: #{tpu_custom_call.1} parent=5 // pred_check
        %p232 = pneg %p231
      $region26: #{tpu_custom_call.1} parent=5 // pred_check_branch
        %234 = sbr.rel (%p232) target = $region28
      $region27: #{tpu_custom_call.1} parent=5 // pred_region
        // Predicated region
        $region29: #{tpu_custom_call.1} parent=27 // pred_check
          %p235 = pneg %p47
        $region30: #{tpu_custom_call.1} parent=27 // pred_check_branch
          %237 = sbr.rel (%p235) target = $region32
        $region31: #{tpu_custom_call.1} parent=27 // pred_region
          %s238 = smul.u32 16, %s22
          %p239 = scmp.lt.s32.totalorder %s238, 31
          %s240 = scalar_select %p239, %s238, 31
          %s241 = smul.addr %s240, 2
          %s242 = smul.addr %s241, 4
          %s243 = scalar_lea.vmem %s0, %s242
          %s244 = smul.u32 16, %s22
        $region32: #{tpu_custom_call.1} parent=27 // pred_fallthru
          _
        // Predicated region
        $region33: #{tpu_custom_call.1} parent=27 // pred_check
          %p245 = pneg %p125
        $region34: #{tpu_custom_call.1} parent=27 // pred_check_branch
          %247 = sbr.rel (%p245) target = $region36
        $region35: #{tpu_custom_call.1} parent=27 // pred_region
          %s248 = smul.u32 16, %s22
          %p249 = scmp.lt.s32.totalorder %s248, 31
          %s250 = scalar_select %p249, %s248, 31
          %s251 = smul.addr %s250, 8
          %s252 = scalar_lea.vmem %s3, %s251
          %s253 = smul.u32 16, %s22
        $region36: #{tpu_custom_call.1} parent=27 // pred_fallthru
          _
      $region28: #{tpu_custom_call.1} parent=5 // pred_fallthru
        _
      %p254 = scmp.le.s32.totalorder 1, %s15
      %p255 = scmp.lt.s32.totalorder %s15, 3
      %p256 = pnand %p254, %p255
      %p257 = pneg %p256
      // Predicated region
      $region37: #{tpu_custom_call.1} parent=5 // pred_check
        _
      $region38: #{tpu_custom_call.1} parent=5 // pred_check_branch
        %259 = sbr.rel (%p256) target = $region40
      $region39: #{tpu_custom_call.1} parent=5 // pred_region
        %s260 = ssub.s32 %s15, 1
        // Predicated region
        $region41: #{tpu_custom_call.1} parent=39 // pred_check
          %p261 = pneg %p79
        $region42: #{tpu_custom_call.1} parent=39 // pred_check_branch
          %263 = sbr.rel (%p261) target = $region44
        $region43: #{tpu_custom_call.1} parent=39 // pred_region
          %264 = dma.done [#allocation3], 4096
        $region44: #{tpu_custom_call.1} parent=39 // pred_fallthru
          _
        %s265 = smul.u32 16, %s24
        %p266 = scmp.lt.s32.totalorder %s265, 31
        %s267 = scalar_select %p266, %s265, 31
        %s268 = smul.addr %s267, 2
        %s269 = smul.addr %s268, 4
        %s270 = scalar_lea.vmem %s0, %s269
        %p271 = pneg %p53
        %p272 = pneg %p50
        %p273 = pneg %p79
        %p274 = pneg %p76
        %s275 = smul.u32 2, %s25
        %p276 = scmp.lt.s32.totalorder %s275, 1
        %s277 = scalar_select %p276, %s275, 1
        %s278 = scalar_lea.vmem %s2, %s277
        %p279 = pneg %p105
        %p280 = pneg %p102
        %s281 = smul.u32 16, %s24
        %p282 = scmp.lt.s32.totalorder %s281, 31
        %s283 = scalar_select %p282, %s281, 31
        %s284 = smul.addr %s283, 8
        %s285 = scalar_lea.vmem %s3, %s284
        %p286 = pneg %p131
        %p287 = pneg %p128
        %s288 = smul.u32 2, %s25
        %p289 = scmp.lt.s32.totalorder %s288, 1
        %s290 = scalar_select %p289, %s288, 1
        %s291 = scalar_lea.vmem %s4, %s290
        %p292 = pneg %p157
        %p293 = pneg %p154
        %p294 = pneg %p183
        %p295 = pneg %p180
        %s296 = sand.u32 %s170, 1
        %s297 = scalar_lea.sflag [#allocation4], %s296
        %s298 = sand.u32 %s170, 1
        %s299 = smul.addr %s298, 16
        %s300 = scalar_lea.vmem [#allocation5], %s299
        %s301 = smul.u32 16, %s24
        %p302 = scmp.lt.s32.totalorder %s301, 31
        %s303 = scalar_select %p302, %s301, 31
        %s304 = smul.addr %s303, 2
        %s305 = smul.addr %s304, 4
        %s306 = scalar_lea.vmem %s0, %s305
        %s307 = smul.u32 16, %s24
        %s308 = smul.u32 32, %s25
        %s309 = smul.u32 2, %s25
        %p310 = scmp.lt.s32.totalorder %s309, 1
        %s311 = scalar_select %p310, %s309, 1
        %s312 = scalar_lea.vmem %s2, %s311
        %s313 = smul.u32 2, %s25
        %s314 = smul.u32 16, %s24
        %p315 = scmp.lt.s32.totalorder %s314, 31
        %s316 = scalar_select %p315, %s314, 31
        %s317 = smul.addr %s316, 8
        %s318 = scalar_lea.vmem %s3, %s317
        %s319 = smul.u32 16, %s24
        %s320 = smul.u32 2, %s25
        %p321 = scmp.lt.s32.totalorder %s320, 1
        %s322 = scalar_select %p321, %s320, 1
        %s323 = scalar_lea.vmem %s4, %s322
        %s324 = smul.u32 2, %s25
        %p325 = scmp.eq.s32.totalorder %s25, 0
        // Predicated region
        $region45: #{tpu_custom_call.1} parent=39 // pred_check
          %p326 = pneg %p325
        $region46: #{tpu_custom_call.1} parent=39 // pred_check_branch
          %328 = sbr.rel (%p326) target = $region48
        $region47: #{tpu_custom_call.1} parent=39 // pred_region
          %329 = vst [vmem:[%s300] sm:$0xff] 0.0
          %330 = vst [vmem:[%s300 + $0x8] sm:$0xff] 0.0
        $region48: #{tpu_custom_call.1} parent=39 // pred_fallthru
          _
        %v331 = vld [vmem:[%s306] sm:$0xff]
        %v332 = vld [vmem:[%s306 + $0x8] sm:$0xff]
        %v333 = vld [vmem:[%s306 + $0x10] sm:$0xff]
        %v334 = vld [vmem:[%s306 + $0x18] sm:$0xff]
        %v335 = vld [vmem:[%s306 + $0x20] sm:$0xff]
        %v336 = vld [vmem:[%s306 + $0x28] sm:$0xff]
        %v337 = vld [vmem:[%s306 + $0x30] sm:$0xff]
        %v338 = vld [vmem:[%s306 + $0x38] sm:$0xff]
        %v339 = vld [vmem:[%s306 + $0x40] sm:$0xff]
        %v340 = vld [vmem:[%s306 + $0x48] sm:$0xff]
        %v341 = vld [vmem:[%s306 + $0x50] sm:$0xff]
        %v342 = vld [vmem:[%s306 + $0x58] sm:$0xff]
        %v343 = vld [vmem:[%s306 + $0x60] sm:$0xff]
        %v344 = vld [vmem:[%s306 + $0x68] sm:$0xff]
        %v345 = vld [vmem:[%s306 + $0x70] sm:$0xff]
        %v346 = vld [vmem:[%s306 + $0x78] sm:$0xff]
        %v347 = vld [vmem:[#allocation2] sm:$0xff]
        %v348 = vld [vmem:[#allocation2 + $0x8] sm:$0xff]
        %v349 = vld [vmem:[#allocation2 + $0x10] sm:$0xff]
        %v350 = vld [vmem:[#allocation2 + $0x18] sm:$0xff]
        %v351 = vld [vmem:[#allocation2 + $0x20] sm:$0xff]
        %v352 = vld [vmem:[#allocation2 + $0x28] sm:$0xff]
        %v353 = vld [vmem:[#allocation2 + $0x30] sm:$0xff]
        %v354 = vld [vmem:[#allocation2 + $0x38] sm:$0xff]
        %v355 = vld [vmem:[#allocation2 + $0x40] sm:$0xff]
        %v356 = vld [vmem:[#allocation2 + $0x48] sm:$0xff]
        %v357 = vld [vmem:[#allocation2 + $0x50] sm:$0xff]
        %v358 = vld [vmem:[#allocation2 + $0x58] sm:$0xff]
        %v359 = vld [vmem:[#allocation2 + $0x60] sm:$0xff]
        %v360 = vld [vmem:[#allocation2 + $0x68] sm:$0xff]
        %v361 = vld [vmem:[#allocation2 + $0x70] sm:$0xff]
        %v362 = vld [vmem:[#allocation2 + $0x78] sm:$0xff]
        %v363 = vld [vmem:[#allocation2 + $0x80] sm:$0xff]
        %v364 = vld [vmem:[#allocation2 + $0x88] sm:$0xff]
        %v365 = vld [vmem:[#allocation2 + $0x90] sm:$0xff]
        %v366 = vld [vmem:[#allocation2 + $0x98] sm:$0xff]
        %v367 = vld [vmem:[#allocation2 + $0xa0] sm:$0xff]
        %v368 = vld [vmem:[#allocation2 + $0xa8] sm:$0xff]
        %v369 = vld [vmem:[#allocation2 + $0xb0] sm:$0xff]
        %v370 = vld [vmem:[#allocation2 + $0xb8] sm:$0xff]
        %v371 = vld [vmem:[#allocation2 + $0xc0] sm:$0xff]
        %v372 = vld [vmem:[#allocation2 + $0xc8] sm:$0xff]
        %v373 = vld [vmem:[#allocation2 + $0xd0] sm:$0xff]
        %v374 = vld [vmem:[#allocation2 + $0xd8] sm:$0xff]
        %v375 = vld [vmem:[#allocation2 + $0xe0] sm:$0xff]
        %v376 = vld [vmem:[#allocation2 + $0xe8] sm:$0xff]
        %v377 = vld [vmem:[#allocation2 + $0xf0] sm:$0xff]
        %v378 = vld [vmem:[#allocation2 + $0xf8] sm:$0xff]
        %v395 = vunpack.c.l.b16 %v331
        %v396 = vunpack.c.h.b16 %v331
        %v397 = vunpack.c.l.b16 %v332
        %v398 = vunpack.c.h.b16 %v332
        %v399 = vunpack.c.l.b16 %v333
        %v400 = vunpack.c.h.b16 %v333
        %v401 = vunpack.c.l.b16 %v334
        %v402 = vunpack.c.h.b16 %v334
        %v403 = vunpack.c.l.b16 %v335
        %v404 = vunpack.c.h.b16 %v335
        %v405 = vunpack.c.l.b16 %v336
        %v406 = vunpack.c.h.b16 %v336
        %v407 = vunpack.c.l.b16 %v337
        %v408 = vunpack.c.h.b16 %v337
        %v409 = vunpack.c.l.b16 %v338
        %v410 = vunpack.c.h.b16 %v338
        %v411 = vunpack.c.l.b16 %v339
        %v412 = vunpack.c.h.b16 %v339
        %v413 = vunpack.c.l.b16 %v340
        %v414 = vunpack.c.h.b16 %v340
        %v415 = vunpack.c.l.b16 %v341
        %v416 = vunpack.c.h.b16 %v341
        %v417 = vunpack.c.l.b16 %v342
        %v418 = vunpack.c.h.b16 %v342
        %v419 = vunpack.c.l.b16 %v343
        %v420 = vunpack.c.h.b16 %v343
        %v421 = vunpack.c.l.b16 %v344
        %v422 = vunpack.c.h.b16 %v344
        %v423 = vunpack.c.l.b16 %v345
        %v424 = vunpack.c.h.b16 %v345
        %v425 = vunpack.c.l.b16 %v346
        %v426 = vunpack.c.h.b16 %v346
        %v427 = vpack.c.b16 %v397, %v395
        %v428 = vpack.c.b16 %v398, %v396
        %v429 = vpack.c.b16 %v401, %v399
        %v430 = vpack.c.b16 %v402, %v400
        %v431 = vpack.c.b16 %v405, %v403
        %v432 = vpack.c.b16 %v406, %v404
        %v433 = vpack.c.b16 %v409, %v407
        %v434 = vpack.c.b16 %v410, %v408
        %v435 = vpack.c.b16 %v413, %v411
        %v436 = vpack.c.b16 %v414, %v412
        %v437 = vpack.c.b16 %v417, %v415
        %v438 = vpack.c.b16 %v418, %v416
        %v439 = vpack.c.b16 %v421, %v419
        %v440 = vpack.c.b16 %v422, %v420
        %v441 = vpack.c.b16 %v425, %v423
        %v442 = vpack.c.b16 %v426, %v424
        %v491 = vunpack.c.l.b16 %v347
        %v492 = vunpack.c.h.b16 %v347
        %v493 = vunpack.c.l.b16 %v348
        %v494 = vunpack.c.h.b16 %v348
        %v495 = vunpack.c.l.b16 %v349
        %v496 = vunpack.c.h.b16 %v349
        %v497 = vunpack.c.l.b16 %v350
        %v498 = vunpack.c.h.b16 %v350
        %v499 = vunpack.c.l.b16 %v351
        %v500 = vunpack.c.h.b16 %v351
        %v501 = vunpack.c.l.b16 %v352
        %v502 = vunpack.c.h.b16 %v352
        %v503 = vunpack.c.l.b16 %v353
        %v504 = vunpack.c.h.b16 %v353
        %v505 = vunpack.c.l.b16 %v354
        %v506 = vunpack.c.h.b16 %v354
        %v507 = vunpack.c.l.b16 %v355
        %v508 = vunpack.c.h.b16 %v355
        %v509 = vunpack.c.l.b16 %v356
        %v510 = vunpack.c.h.b16 %v356
        %v511 = vunpack.c.l.b16 %v357
        %v512 = vunpack.c.h.b16 %v357
        %v513 = vunpack.c.l.b16 %v358
        %v514 = vunpack.c.h.b16 %v358
        %v515 = vunpack.c.l.b16 %v359
        %v516 = vunpack.c.h.b16 %v359
        %v517 = vunpack.c.l.b16 %v360
        %v518 = vunpack.c.h.b16 %v360
        %v519 = vunpack.c.l.b16 %v361
        %v520 = vunpack.c.h.b16 %v361
        %v521 = vunpack.c.l.b16 %v362
        %v522 = vunpack.c.h.b16 %v362
        %v523 = vunpack.c.l.b16 %v363
        %v524 = vunpack.c.h.b16 %v363
        %v525 = vunpack.c.l.b16 %v364
        %v526 = vunpack.c.h.b16 %v364
        %v527 = vunpack.c.l.b16 %v365
        %v528 = vunpack.c.h.b16 %v365
        %v529 = vunpack.c.l.b16 %v366
        %v530 = vunpack.c.h.b16 %v366
        %v531 = vunpack.c.l.b16 %v367
        %v532 = vunpack.c.h.b16 %v367
        %v533 = vunpack.c.l.b16 %v368
        %v534 = vunpack.c.h.b16 %v368
        %v535 = vunpack.c.l.b16 %v369
        %v536 = vunpack.c.h.b16 %v369
        %v537 = vunpack.c.l.b16 %v370
        %v538 = vunpack.c.h.b16 %v370
        %v539 = vunpack.c.l.b16 %v371
        %v540 = vunpack.c.h.b16 %v371
        %v541 = vunpack.c.l.b16 %v372
        %v542 = vunpack.c.h.b16 %v372
        %v543 = vunpack.c.l.b16 %v373
        %v544 = vunpack.c.h.b16 %v373
        %v545 = vunpack.c.l.b16 %v374
        %v546 = vunpack.c.h.b16 %v374
        %v547 = vunpack.c.l.b16 %v375
        %v548 = vunpack.c.h.b16 %v375
        %v549 = vunpack.c.l.b16 %v376
        %v550 = vunpack.c.h.b16 %v376
        %v551 = vunpack.c.l.b16 %v377
        %v552 = vunpack.c.h.b16 %v377
        %v553 = vunpack.c.l.b16 %v378
        %v554 = vunpack.c.h.b16 %v378
        %v555 = vpack.c.b16 %v493, %v491
        %v556 = vpack.c.b16 %v494, %v492
        %v557 = vpack.c.b16 %v497, %v495
        %v558 = vpack.c.b16 %v498, %v496
        %v559 = vpack.c.b16 %v501, %v499
        %v560 = vpack.c.b16 %v502, %v500
        %v561 = vpack.c.b16 %v505, %v503
        %v562 = vpack.c.b16 %v506, %v504
        %v563 = vpack.c.b16 %v509, %v507
        %v564 = vpack.c.b16 %v510, %v508
        %v565 = vpack.c.b16 %v513, %v511
        %v566 = vpack.c.b16 %v514, %v512
        %v567 = vpack.c.b16 %v517, %v515
        %v568 = vpack.c.b16 %v518, %v516
        %v569 = vpack.c.b16 %v521, %v519
        %v570 = vpack.c.b16 %v522, %v520
        %v571 = vpack.c.b16 %v525, %v523
        %v572 = vpack.c.b16 %v526, %v524
        %v573 = vpack.c.b16 %v529, %v527
        %v574 = vpack.c.b16 %v530, %v528
        %v575 = vpack.c.b16 %v533, %v531
        %v576 = vpack.c.b16 %v534, %v532
        %v577 = vpack.c.b16 %v537, %v535
        %v578 = vpack.c.b16 %v538, %v536
        %v579 = vpack.c.b16 %v541, %v539
        %v580 = vpack.c.b16 %v542, %v540
        %v581 = vpack.c.b16 %v545, %v543
        %v582 = vpack.c.b16 %v546, %v544
        %v583 = vpack.c.b16 %v549, %v547
        %v584 = vpack.c.b16 %v550, %v548
        %v585 = vpack.c.b16 %v553, %v551
        %v586 = vpack.c.b16 %v554, %v552
        %619 = vmatprep.subr.bf16.mxu0 %v556
        %620 = vmatpush1.bf16.xpose.msra.mxu0 %v555
        %621 = vmatprep.subr.bf16.mxu0 %v558
        %622 = vmatpush1.bf16.xpose.msra.mxu0 %v557
        %623 = vmatprep.subr.bf16.mxu0 %v560
        %624 = vmatpush1.bf16.xpose.msra.mxu0 %v559
        %625 = vmatprep.subr.bf16.mxu0 %v562
        %626 = vmatpush1.bf16.xpose.msra.mxu0 %v561
        %627 = vmatprep.subr.bf16.mxu0 %v564
        %628 = vmatpush1.bf16.xpose.msra.mxu0 %v563
        %629 = vmatprep.subr.bf16.mxu0 %v566
        %630 = vmatpush1.bf16.xpose.msra.mxu0 %v565
        %631 = vmatprep.subr.bf16.mxu0 %v568
        %632 = vmatpush1.bf16.xpose.msra.mxu0 %v567
        %633 = vmatprep.subr.bf16.mxu0 %v570
        %634 = vmatpush1.bf16.xpose.msra.mxu0 %v569
        %635 = vmatprep.subr.bf16.mxu0 %v572
        %636 = vmatpush1.bf16.xpose.msra.mxu0 %v571
        %637 = vmatprep.subr.bf16.mxu0 %v574
        %638 = vmatpush1.bf16.xpose.msra.mxu0 %v573
        %639 = vmatprep.subr.bf16.mxu0 %v576
        %640 = vmatpush1.bf16.xpose.msra.mxu0 %v575
        %641 = vmatprep.subr.bf16.mxu0 %v578
        %642 = vmatpush1.bf16.xpose.msra.mxu0 %v577
        %643 = vmatprep.subr.bf16.mxu0 %v580
        %644 = vmatpush1.bf16.xpose.msra.mxu0 %v579
        %645 = vmatprep.subr.bf16.mxu0 %v582
        %646 = vmatpush1.bf16.xpose.msra.mxu0 %v581
        %647 = vmatprep.subr.bf16.mxu0 %v584
        %648 = vmatpush1.bf16.xpose.msra.mxu0 %v583
        %649 = vmatprep.subr.bf16.mxu0 %v586
        %650 = vmatpush1.bf16.xpose.msra.mxu0 %v585
        %651 = vmatprep.mubr.bf16.mxu0 %v428
        %652 = vmatmul.mubr.bf16.gmra.mrb[0].mxu0 %v427
        %v653 = vpop.f32.mrb[0].mxu0
        %v654 = vadd.f32 0.0, %v653
        %v655 = vpop.f32.mrb[0].mxu0
        %v656 = vadd.f32 0.0, %v655
        %v657 = vpop.f32.mrb[0].mxu0
        %v658 = vadd.f32 0.0, %v657
        %v659 = vpop.f32.mrb[0].mxu0
        %v660 = vadd.f32 0.0, %v659
        %661 = vmatprep.mubr.bf16.mxu0 %v430
        %662 = vmatmul.mubr.bf16.gmra.mrb[0].mxu0 %v429
        %v663 = vpop.f32.mrb[0].mxu0
        %v664 = vadd.f32 0.0, %v663
        %v665 = vpop.f32.mrb[0].mxu0
        %v666 = vadd.f32 0.0, %v665
        %v667 = vpop.f32.mrb[0].mxu0
        %v668 = vadd.f32 0.0, %v667
        %v669 = vpop.f32.mrb[0].mxu0
        %v670 = vadd.f32 0.0, %v669
        %671 = vmatprep.mubr.bf16.mxu0 %v432
        %672 = vmatmul.mubr.bf16.gmra.mrb[0].mxu0 %v431
        %v673 = vpop.f32.mrb[0].mxu0
        %v674 = vadd.f32 0.0, %v673
        %v675 = vpop.f32.mrb[0].mxu0
        %v676 = vadd.f32 0.0, %v675
        %v677 = vpop.f32.mrb[0].mxu0
        %v678 = vadd.f32 0.0, %v677
        %v679 = vpop.f32.mrb[0].mxu0
        %v680 = vadd.f32 0.0, %v679
        %681 = vmatprep.mubr.bf16.mxu0 %v434
        %682 = vmatmul.mubr.bf16.gmra.mrb[0].mxu0 %v433
        %v683 = vpop.f32.mrb[0].mxu0
        %v684 = vadd.f32 0.0, %v683
        %v685 = vpop.f32.mrb[0].mxu0
        %v686 = vadd.f32 0.0, %v685
        %v687 = vpop.f32.mrb[0].mxu0
        %v688 = vadd.f32 0.0, %v687
        %v689 = vpop.f32.mrb[0].mxu0
        %v690 = vadd.f32 0.0, %v689
        %691 = vmatprep.mubr.bf16.mxu0 %v436
        %692 = vmatmul.mubr.bf16.gmra.mrb[0].mxu0 %v435
        %v693 = vpop.f32.mrb[0].mxu0
        %v694 = vadd.f32 0.0, %v693
        %v695 = vpop.f32.mrb[0].mxu0
        %v696 = vadd.f32 0.0, %v695
        %v697 = vpop.f32.mrb[0].mxu0
        %v698 = vadd.f32 0.0, %v697
        %v699 = vpop.f32.mrb[0].mxu0
        %v700 = vadd.f32 0.0, %v699
        %701 = vmatprep.mubr.bf16.mxu0 %v438
        %702 = vmatmul.mubr.bf16.gmra.mrb[0].mxu0 %v437
        %v703 = vpop.f32.mrb[0].mxu0
        %v704 = vadd.f32 0.0, %v703
        %v705 = vpop.f32.mrb[0].mxu0
        %v706 = vadd.f32 0.0, %v705
        %v707 = vpop.f32.mrb[0].mxu0
        %v708 = vadd.f32 0.0, %v707
        %v709 = vpop.f32.mrb[0].mxu0
        %v710 = vadd.f32 0.0, %v709
        %711 = vmatprep.mubr.bf16.mxu0 %v440
        %712 = vmatmul.mubr.bf16.gmra.mrb[0].mxu0 %v439
        %v713 = vpop.f32.mrb[0].mxu0
        %v714 = vadd.f32 0.0, %v713
        %v715 = vpop.f32.mrb[0].mxu0
        %v716 = vadd.f32 0.0, %v715
        %v717 = vpop.f32.mrb[0].mxu0
        %v718 = vadd.f32 0.0, %v717
        %v719 = vpop.f32.mrb[0].mxu0
        %v720 = vadd.f32 0.0, %v719
        %721 = vmatprep.mubr.bf16.mxu0 %v442
        %722 = vmatmul.mubr.bf16.gmra.mrb[0].mxu0 %v441
        %v723 = vpop.f32.mrb[0].mxu0
        %v724 = vadd.f32 0.0, %v723
        %v725 = vpop.f32.mrb[0].mxu0
        %v726 = vadd.f32 0.0, %v725
        %v727 = vpop.f32.mrb[0].mxu0
        %v728 = vadd.f32 0.0, %v727
        %v729 = vpop.f32.mrb[0].mxu0
        %v730 = vadd.f32 0.0, %v729
        %731 = vdwg.mxu0
        %v732 = vld [vmem:[%s318] sm:$0xff]
        %v733 = vld [vmem:[%s318 + $0x8] sm:$0xff]
        %v734 = vld [vmem:[%s318 + $0x10] sm:$0xff]
        %v735 = vld [vmem:[%s318 + $0x18] sm:$0xff]
        %v736 = vld [vmem:[%s318 + $0x20] sm:$0xff]
        %v737 = vld [vmem:[%s318 + $0x28] sm:$0xff]
        %v738 = vld [vmem:[%s318 + $0x30] sm:$0xff]
        %v739 = vld [vmem:[%s318 + $0x38] sm:$0xff]
        %v740 = vld [vmem:[%s318 + $0x40] sm:$0xff]
        %v741 = vld [vmem:[%s318 + $0x48] sm:$0xff]
        %v742 = vld [vmem:[%s318 + $0x50] sm:$0xff]
        %v743 = vld [vmem:[%s318 + $0x58] sm:$0xff]
        %v744 = vld [vmem:[%s318 + $0x60] sm:$0xff]
        %v745 = vld [vmem:[%s318 + $0x68] sm:$0xff]
        %v746 = vld [vmem:[%s318 + $0x70] sm:$0xff]
        %v747 = vld [vmem:[%s318 + $0x78] sm:$0xff]
        %v748 = vld [vmem:[%s323] sm:$0x3]
        %749 = vset.pattern.permute.xlu0 0
        %750 = vperm.xlu0 %749, %v732
        %v751 = vpop.permute.xlu0 %750
        %752 = vset.pattern.permute.xlu0 0
        %753 = vperm.xlu0 %752, %v733
        %v754 = vpop.permute.xlu0 %753
        %755 = vset.pattern.permute.xlu0 0
        %756 = vperm.xlu0 %755, %v734
        %v757 = vpop.permute.xlu0 %756
        %758 = vset.pattern.permute.xlu0 0
        %759 = vperm.xlu0 %758, %v735
        %v760 = vpop.permute.xlu0 %759
        %761 = vset.pattern.permute.xlu0 0
        %762 = vperm.xlu0 %761, %v736
        %v763 = vpop.permute.xlu0 %762
        %764 = vset.pattern.permute.xlu0 0
        %765 = vperm.xlu0 %764, %v737
        %v766 = vpop.permute.xlu0 %765
        %767 = vset.pattern.permute.xlu0 0
        %768 = vperm.xlu0 %767, %v738
        %v769 = vpop.permute.xlu0 %768
        %770 = vset.pattern.permute.xlu0 0
        %771 = vperm.xlu0 %770, %v739
        %v772 = vpop.permute.xlu0 %771
        %773 = vset.pattern.permute.xlu0 0
        %774 = vperm.xlu0 %773, %v740
        %v775 = vpop.permute.xlu0 %774
        %776 = vset.pattern.permute.xlu0 0
        %777 = vperm.xlu0 %776, %v741
        %v778 = vpop.permute.xlu0 %777
        %779 = vset.pattern.permute.xlu0 0
        %780 = vperm.xlu0 %779, %v742
        %v781 = vpop.permute.xlu0 %780
        %782 = vset.pattern.permute.xlu0 0
        %783 = vperm.xlu0 %782, %v743
        %v784 = vpop.permute.xlu0 %783
        %785 = vset.pattern.permute.xlu0 0
        %786 = vperm.xlu0 %785, %v744
        %v787 = vpop.permute.xlu0 %786
        %788 = vset.pattern.permute.xlu0 0
        %789 = vperm.xlu0 %788, %v745
        %v790 = vpop.permute.xlu0 %789
        %791 = vset.pattern.permute.xlu0 0
        %792 = vperm.xlu0 %791, %v746
        %v793 = vpop.permute.xlu0 %792
        %794 = vset.pattern.permute.xlu0 0
        %795 = vperm.xlu0 %794, %v747
        %v796 = vpop.permute.xlu0 %795
        %v797 = vlaneseq
        %v798 = vshrl.u32 %v797, 7
        %v799 = vsub.s32 0, %v798
        %v800 = vrot.slane %v748, %v799
        %v801 = vlaneseq
        %v802 = vshrl.u32 %v801, 7
        %v803 = vsub.s32 1, %v802
        %v804 = vrot.slane %v748, %v803
        %vm805 = vcmp.ne.s32.totalorder %v751, %v800
        %vm806 = vcmp.ne.s32.totalorder %v751, %v804
        %vm807 = vcmp.ne.s32.totalorder %v754, %v800
        %vm808 = vcmp.ne.s32.totalorder %v754, %v804
        %vm809 = vcmp.ne.s32.totalorder %v757, %v800
        %vm810 = vcmp.ne.s32.totalorder %v757, %v804
        %vm811 = vcmp.ne.s32.totalorder %v760, %v800
        %vm812 = vcmp.ne.s32.totalorder %v760, %v804
        %vm813 = vcmp.ne.s32.totalorder %v763, %v800
        %vm814 = vcmp.ne.s32.totalorder %v763, %v804
        %vm815 = vcmp.ne.s32.totalorder %v766, %v800
        %vm816 = vcmp.ne.s32.totalorder %v766, %v804
        %vm817 = vcmp.ne.s32.totalorder %v769, %v800
        %vm818 = vcmp.ne.s32.totalorder %v769, %v804
        %vm819 = vcmp.ne.s32.totalorder %v772, %v800
        %vm820 = vcmp.ne.s32.totalorder %v772, %v804
        %vm821 = vcmp.ne.s32.totalorder %v775, %v800
        %vm822 = vcmp.ne.s32.totalorder %v775, %v804
        %vm823 = vcmp.ne.s32.totalorder %v778, %v800
        %vm824 = vcmp.ne.s32.totalorder %v778, %v804
        %vm825 = vcmp.ne.s32.totalorder %v781, %v800
        %vm826 = vcmp.ne.s32.totalorder %v781, %v804
        %vm827 = vcmp.ne.s32.totalorder %v784, %v800
        %vm828 = vcmp.ne.s32.totalorder %v784, %v804
        %vm829 = vcmp.ne.s32.totalorder %v787, %v800
        %vm830 = vcmp.ne.s32.totalorder %v787, %v804
        %vm831 = vcmp.ne.s32.totalorder %v790, %v800
        %vm832 = vcmp.ne.s32.totalorder %v790, %v804
        %vm833 = vcmp.ne.s32.totalorder %v793, %v800
        %vm834 = vcmp.ne.s32.totalorder %v793, %v804
        %vm835 = vcmp.ne.s32.totalorder %v796, %v800
        %vm836 = vcmp.ne.s32.totalorder %v796, %v804
        %vm837 = vcmp.ge.s32.totalorder %v732, 0
        %vm838 = vcmp.ge.s32.totalorder %v733, 0
        %vm839 = vcmp.ge.s32.totalorder %v734, 0
        %vm840 = vcmp.ge.s32.totalorder %v735, 0
        %vm841 = vcmp.ge.s32.totalorder %v736, 0
        %vm842 = vcmp.ge.s32.totalorder %v737, 0
        %vm843 = vcmp.ge.s32.totalorder %v738, 0
        %vm844 = vcmp.ge.s32.totalorder %v739, 0
        %vm845 = vcmp.ge.s32.totalorder %v740, 0
        %vm846 = vcmp.ge.s32.totalorder %v741, 0
        %vm847 = vcmp.ge.s32.totalorder %v742, 0
        %vm848 = vcmp.ge.s32.totalorder %v743, 0
        %vm849 = vcmp.ge.s32.totalorder %v744, 0
        %vm850 = vcmp.ge.s32.totalorder %v745, 0
        %vm851 = vcmp.ge.s32.totalorder %v746, 0
        %vm852 = vcmp.ge.s32.totalorder %v747, 0
        %v853 = vsel %vm837, 1, 0
        %v854 = vsel %vm838, 1, 0
        %v855 = vsel %vm839, 1, 0
        %v856 = vsel %vm840, 1, 0
        %v857 = vsel %vm841, 1, 0
        %v858 = vsel %vm842, 1, 0
        %v859 = vsel %vm843, 1, 0
        %v860 = vsel %vm844, 1, 0
        %v861 = vsel %vm845, 1, 0
        %v862 = vsel %vm846, 1, 0
        %v863 = vsel %vm847, 1, 0
        %v864 = vsel %vm848, 1, 0
        %v865 = vsel %vm849, 1, 0
        %v866 = vsel %vm850, 1, 0
        %v867 = vsel %vm851, 1, 0
        %v868 = vsel %vm852, 1, 0
        %869 = vset.pattern.permute.xlu0 0
        %870 = vperm.xlu0 %869, %v853
        %v871 = vpop.permute.xlu0 %870
        %872 = vset.pattern.permute.xlu0 0
        %873 = vperm.xlu0 %872, %v854
        %v874 = vpop.permute.xlu0 %873
        %875 = vset.pattern.permute.xlu0 0
        %876 = vperm.xlu0 %875, %v855
        %v877 = vpop.permute.xlu0 %876
        %878 = vset.pattern.permute.xlu0 0
        %879 = vperm.xlu0 %878, %v856
        %v880 = vpop.permute.xlu0 %879
        %881 = vset.pattern.permute.xlu0 0
        %882 = vperm.xlu0 %881, %v857
        %v883 = vpop.permute.xlu0 %882
        %884 = vset.pattern.permute.xlu0 0
        %885 = vperm.xlu0 %884, %v858
        %v886 = vpop.permute.xlu0 %885
        %887 = vset.pattern.permute.xlu0 0
        %888 = vperm.xlu0 %887, %v859
        %v889 = vpop.permute.xlu0 %888
        %890 = vset.pattern.permute.xlu0 0
        %891 = vperm.xlu0 %890, %v860
        %v892 = vpop.permute.xlu0 %891
        %893 = vset.pattern.permute.xlu0 0
        %894 = vperm.xlu0 %893, %v861
        %v895 = vpop.permute.xlu0 %894
        %896 = vset.pattern.permute.xlu0 0
        %897 = vperm.xlu0 %896, %v862
        %v898 = vpop.permute.xlu0 %897
        %899 = vset.pattern.permute.xlu0 0
        %900 = vperm.xlu0 %899, %v863
        %v901 = vpop.permute.xlu0 %900
        %902 = vset.pattern.permute.xlu0 0
        %903 = vperm.xlu0 %902, %v864
        %v904 = vpop.permute.xlu0 %903
        %905 = vset.pattern.permute.xlu0 0
        %906 = vperm.xlu0 %905, %v865
        %v907 = vpop.permute.xlu0 %906
        %908 = vset.pattern.permute.xlu0 0
        %909 = vperm.xlu0 %908, %v866
        %v910 = vpop.permute.xlu0 %909
        %911 = vset.pattern.permute.xlu0 0
        %912 = vperm.xlu0 %911, %v867
        %v913 = vpop.permute.xlu0 %912
        %914 = vset.pattern.permute.xlu0 0
        %915 = vperm.xlu0 %914, %v868
        %v916 = vpop.permute.xlu0 %915
        %vm917 = vcmp.eq.s32.totalorder %v871, 1
        %vm918 = vcmp.eq.s32.totalorder %v874, 1
        %vm919 = vcmp.eq.s32.totalorder %v877, 1
        %vm920 = vcmp.eq.s32.totalorder %v880, 1
        %vm921 = vcmp.eq.s32.totalorder %v883, 1
        %vm922 = vcmp.eq.s32.totalorder %v886, 1
        %vm923 = vcmp.eq.s32.totalorder %v889, 1
        %vm924 = vcmp.eq.s32.totalorder %v892, 1
        %vm925 = vcmp.eq.s32.totalorder %v895, 1
        %vm926 = vcmp.eq.s32.totalorder %v898, 1
        %vm927 = vcmp.eq.s32.totalorder %v901, 1
        %vm928 = vcmp.eq.s32.totalorder %v904, 1
        %vm929 = vcmp.eq.s32.totalorder %v907, 1
        %vm930 = vcmp.eq.s32.totalorder %v910, 1
        %vm931 = vcmp.eq.s32.totalorder %v913, 1
        %vm932 = vcmp.eq.s32.totalorder %v916, 1
        %vm933 = vmand %vm805, %vm917
        %vm934 = vmand %vm806, %vm917
        %vm935 = vmand %vm807, %vm918
        %vm936 = vmand %vm808, %vm918
        %vm937 = vmand %vm809, %vm919
        %vm938 = vmand %vm810, %vm919
        %vm939 = vmand %vm811, %vm920
        %vm940 = vmand %vm812, %vm920
        %vm941 = vmand %vm813, %vm921
        %vm942 = vmand %vm814, %vm921
        %vm943 = vmand %vm815, %vm922
        %vm944 = vmand %vm816, %vm922
        %vm945 = vmand %vm817, %vm923
        %vm946 = vmand %vm818, %vm923
        %vm947 = vmand %vm819, %vm924
        %vm948 = vmand %vm820, %vm924
        %vm949 = vmand %vm821, %vm925
        %vm950 = vmand %vm822, %vm925
        %vm951 = vmand %vm823, %vm926
        %vm952 = vmand %vm824, %vm926
        %vm953 = vmand %vm825, %vm927
        %vm954 = vmand %vm826, %vm927
        %vm955 = vmand %vm827, %vm928
        %vm956 = vmand %vm828, %vm928
        %vm957 = vmand %vm829, %vm929
        %vm958 = vmand %vm830, %vm929
        %vm959 = vmand %vm831, %vm930
        %vm960 = vmand %vm832, %vm930
        %vm961 = vmand %vm833, %vm931
        %vm962 = vmand %vm834, %vm931
        %vm963 = vmand %vm835, %vm932
        %vm964 = vmand %vm836, %vm932
        %vm965 = vcmp.ge.s32.totalorder %v748, 0
        %v966 = vsel %vm965, 1, 0
        %v967 = vlaneseq
        %v968 = vshrl.u32 %v967, 7
        %v969 = vsub.s32 0, %v968
        %v970 = vrot.slane %v966, %v969
        %v971 = vlaneseq
        %v972 = vshrl.u32 %v971, 7
        %v973 = vsub.s32 1, %v972
        %v974 = vrot.slane %v966, %v973
        %vm975 = vcmp.eq.s32.totalorder %v970, 1
        %vm976 = vcmp.eq.s32.totalorder %v974, 1
        %vm977 = vmand %vm933, %vm975
        %vm978 = vmand %vm934, %vm976
        %vm979 = vmand %vm935, %vm975
        %vm980 = vmand %vm936, %vm976
        %vm981 = vmand %vm937, %vm975
        %vm982 = vmand %vm938, %vm976
        %vm983 = vmand %vm939, %vm975
        %vm984 = vmand %vm940, %vm976
        %vm985 = vmand %vm941, %vm975
        %vm986 = vmand %vm942, %vm976
        %vm987 = vmand %vm943, %vm975
        %vm988 = vmand %vm944, %vm976
        %vm989 = vmand %vm945, %vm975
        %vm990 = vmand %vm946, %vm976
        %vm991 = vmand %vm947, %vm975
        %vm992 = vmand %vm948, %vm976
        %vm993 = vmand %vm949, %vm975
        %vm994 = vmand %vm950, %vm976
        %vm995 = vmand %vm951, %vm975
        %vm996 = vmand %vm952, %vm976
        %vm997 = vmand %vm953, %vm975
        %vm998 = vmand %vm954, %vm976
        %vm999 = vmand %vm955, %vm975
        %vm1000 = vmand %vm956, %vm976
        %vm1001 = vmand %vm957, %vm975
        %vm1002 = vmand %vm958, %vm976
        %vm1003 = vmand %vm959, %vm975
        %vm1004 = vmand %vm960, %vm976
        %vm1005 = vmand %vm961, %vm975
        %vm1006 = vmand %vm962, %vm976
        %vm1007 = vmand %vm963, %vm975
        %vm1008 = vmand %vm964, %vm976
        %v1009 = vld [vmem:[%s312] sm:$0x3]
        %v1010 = vsub.f32 0.1, %v1009
        %v1012 = vlaneseq
        %v1013 = vshrl.u32 %v1012, 7
        %v1014 = vsub.s32 0, %v1013
        %v1015 = vrot.slane %v1010, %v1014
        %v1016 = vlaneseq
        %v1017 = vshrl.u32 %v1016, 7
        %v1018 = vsub.s32 1, %v1017
        %v1019 = vrot.slane %v1010, %v1018
        %v1022 = vadd.f32 %v1015, %v654
        %v1023 = vadd.f32 %v1019, %v656
        %v1024 = vadd.f32 %v1015, %v658
        %v1025 = vadd.f32 %v1019, %v660
        %v1026 = vadd.f32 %v1015, %v664
        %v1027 = vadd.f32 %v1019, %v666
        %v1028 = vadd.f32 %v1015, %v668
        %v1029 = vadd.f32 %v1019, %v670
        %v1030 = vadd.f32 %v1015, %v674
        %v1031 = vadd.f32 %v1019, %v676
        %v1032 = vadd.f32 %v1015, %v678
        %v1033 = vadd.f32 %v1019, %v680
        %v1034 = vadd.f32 %v1015, %v684
        %v1035 = vadd.f32 %v1019, %v686
        %v1036 = vadd.f32 %v1015, %v688
        %v1037 = vadd.f32 %v1019, %v690
        %v1038 = vadd.f32 %v1015, %v694
        %v1039 = vadd.f32 %v1019, %v696
        %v1040 = vadd.f32 %v1015, %v698
        %v1041 = vadd.f32 %v1019, %v700
        %v1042 = vadd.f32 %v1015, %v704
        %v1043 = vadd.f32 %v1019, %v706
        %v1044 = vadd.f32 %v1015, %v708
        %v1045 = vadd.f32 %v1019, %v710
        %v1046 = vadd.f32 %v1015, %v714
        %v1047 = vadd.f32 %v1019, %v716
        %v1048 = vadd.f32 %v1015, %v718
        %v1049 = vadd.f32 %v1019, %v720
        %v1050 = vadd.f32 %v1015, %v724
        %v1051 = vadd.f32 %v1019, %v726
        %v1052 = vadd.f32 %v1015, %v728
        %v1053 = vadd.f32 %v1019, %v730
        %v1054 = vmax.f32 %v1022, 0.0
        %v1055 = vmax.f32 %v1023, 0.0
        %v1056 = vmax.f32 %v1024, 0.0
        %v1057 = vmax.f32 %v1025, 0.0
        %v1058 = vmax.f32 %v1026, 0.0
        %v1059 = vmax.f32 %v1027, 0.0
        %v1060 = vmax.f32 %v1028, 0.0
        %v1061 = vmax.f32 %v1029, 0.0
        %v1062 = vmax.f32 %v1030, 0.0
        %v1063 = vmax.f32 %v1031, 0.0
        %v1064 = vmax.f32 %v1032, 0.0
        %v1065 = vmax.f32 %v1033, 0.0
        %v1066 = vmax.f32 %v1034, 0.0
        %v1067 = vmax.f32 %v1035, 0.0
        %v1068 = vmax.f32 %v1036, 0.0
        %v1069 = vmax.f32 %v1037, 0.0
        %v1070 = vmax.f32 %v1038, 0.0
        %v1071 = vmax.f32 %v1039, 0.0
        %v1072 = vmax.f32 %v1040, 0.0
        %v1073 = vmax.f32 %v1041, 0.0
        %v1074 = vmax.f32 %v1042, 0.0
        %v1075 = vmax.f32 %v1043, 0.0
        %v1076 = vmax.f32 %v1044, 0.0
        %v1077 = vmax.f32 %v1045, 0.0
        %v1078 = vmax.f32 %v1046, 0.0
        %v1079 = vmax.f32 %v1047, 0.0
        %v1080 = vmax.f32 %v1048, 0.0
        %v1081 = vmax.f32 %v1049, 0.0
        %v1082 = vmax.f32 %v1050, 0.0
        %v1083 = vmax.f32 %v1051, 0.0
        %v1084 = vmax.f32 %v1052, 0.0
        %v1085 = vmax.f32 %v1053, 0.0
        %v1086 = vsel %vm977, %v1054, 0.0
        %v1087 = vsel %vm978, %v1055, 0.0
        %v1088 = vsel %vm979, %v1056, 0.0
        %v1089 = vsel %vm980, %v1057, 0.0
        %v1090 = vsel %vm981, %v1058, 0.0
        %v1091 = vsel %vm982, %v1059, 0.0
        %v1092 = vsel %vm983, %v1060, 0.0
        %v1093 = vsel %vm984, %v1061, 0.0
        %v1094 = vsel %vm985, %v1062, 0.0
        %v1095 = vsel %vm986, %v1063, 0.0
        %v1096 = vsel %vm987, %v1064, 0.0
        %v1097 = vsel %vm988, %v1065, 0.0
        %v1098 = vsel %vm989, %v1066, 0.0
        %v1099 = vsel %vm990, %v1067, 0.0
        %v1100 = vsel %vm991, %v1068, 0.0
        %v1101 = vsel %vm992, %v1069, 0.0
        %v1102 = vsel %vm993, %v1070, 0.0
        %v1103 = vsel %vm994, %v1071, 0.0
        %v1104 = vsel %vm995, %v1072, 0.0
        %v1105 = vsel %vm996, %v1073, 0.0
        %v1106 = vsel %vm997, %v1074, 0.0
        %v1107 = vsel %vm998, %v1075, 0.0
        %v1108 = vsel %vm999, %v1076, 0.0
        %v1109 = vsel %vm1000, %v1077, 0.0
        %v1110 = vsel %vm1001, %v1078, 0.0
        %v1111 = vsel %vm1002, %v1079, 0.0
        %v1112 = vsel %vm1003, %v1080, 0.0
        %v1113 = vsel %vm1004, %v1081, 0.0
        %v1114 = vsel %vm1005, %v1082, 0.0
        %v1115 = vsel %vm1006, %v1083, 0.0
        %v1116 = vsel %vm1007, %v1084, 0.0
        %v1117 = vsel %vm1008, %v1085, 0.0
        %v1118 = vadd.f32 %v1086, %v1088
        %v1119 = vadd.f32 %v1087, %v1089
        %v1120 = vadd.f32 %v1118, %v1090
        %v1121 = vadd.f32 %v1119, %v1091
        %v1122 = vadd.f32 %v1120, %v1092
        %v1123 = vadd.f32 %v1121, %v1093
        %v1124 = vadd.f32 %v1122, %v1094
        %v1125 = vadd.f32 %v1123, %v1095
        %v1126 = vadd.f32 %v1124, %v1096
        %v1127 = vadd.f32 %v1125, %v1097
        %v1128 = vadd.f32 %v1126, %v1098
        %v1129 = vadd.f32 %v1127, %v1099
        %v1130 = vadd.f32 %v1128, %v1100
        %v1131 = vadd.f32 %v1129, %v1101
        %v1132 = vadd.f32 %v1130, %v1102
        %v1133 = vadd.f32 %v1131, %v1103
        %v1134 = vadd.f32 %v1132, %v1104
        %v1135 = vadd.f32 %v1133, %v1105
        %v1136 = vadd.f32 %v1134, %v1106
        %v1137 = vadd.f32 %v1135, %v1107
        %v1138 = vadd.f32 %v1136, %v1108
        %v1139 = vadd.f32 %v1137, %v1109
        %v1140 = vadd.f32 %v1138, %v1110
        %v1141 = vadd.f32 %v1139, %v1111
        %v1142 = vadd.f32 %v1140, %v1112
        %v1143 = vadd.f32 %v1141, %v1113
        %v1144 = vadd.f32 %v1142, %v1114
        %v1145 = vadd.f32 %v1143, %v1115
        %v1146 = vadd.f32 %v1144, %v1116
        %v1147 = vadd.f32 %v1145, %v1117
        %v1148 = vld [vmem:[%s300] sm:$0xff]
        %v1149 = vld [vmem:[%s300 + $0x8] sm:$0xff]
        %v1150 = vadd.f32 %v1148, %v1146
        %v1151 = vadd.f32 %v1149, %v1147
        %1152 = vst [vmem:[%s300] sm:$0xff] %v1150
        %1153 = vst [vmem:[%s300 + $0x8] sm:$0xff] %v1151
        %s1154 = sand.u32 %s170, 1
        %s1155 = scalar_lea.sflag [#allocation4], %s1154
        %s1156 = sand.u32 %s170, 1
        %s1157 = smul.addr %s1156, 16
        %s1158 = scalar_lea.vmem [#allocation5], %s1157
        // Predicated region
        $region49: #{tpu_custom_call.1} parent=39 // pred_check
          %p1159 = pneg %p180
        $region50: #{tpu_custom_call.1} parent=39 // pred_check_branch
          %1161 = sbr.rel (%p1159) target = $region52
        $region51: #{tpu_custom_call.1} parent=39 // pred_region
          %s1163 = ssub.s32 256, 256
          %1164 = vsyncadd %s1155, %s1163
          %s1165 = smul.addr %s24, 2
          %s1166 = smul.addr %s1165, 128
          %s1167 = scalar_lea.hbm %s5, %s1166
          %s1169 = sshll.u32 %s1158, 4
          %s1170 = int_to_ptr.vmem [resolvable:$true] %s1169
          %1172 = dma.vmem_to_hbm [thread:$0]  %s1170, 256, %s1167, %s1155
        $region52: #{tpu_custom_call.1} parent=39 // pred_fallthru
          _
      $region40: #{tpu_custom_call.1} parent=5 // pred_fallthru
        _
      %p1173 = scmp.le.s32.totalorder 2, %s15
      // Predicated region
      $region53: #{tpu_custom_call.1} parent=5 // pred_check
        %p1174 = pneg %p1173
      $region54: #{tpu_custom_call.1} parent=5 // pred_check_branch
        %1176 = sbr.rel (%p1174) target = $region56
      $region55: #{tpu_custom_call.1} parent=5 // pred_region
        %s1177 = ssub.s32 %s15, 2
        // Predicated region
        $region57: #{tpu_custom_call.1} parent=55 // pred_check
          %p1178 = pneg %p186
        $region58: #{tpu_custom_call.1} parent=55 // pred_check_branch
          %1180 = sbr.rel (%p1178) target = $region60
        $region59: #{tpu_custom_call.1} parent=55 // pred_region
          %s1181 = sand.u32 %s171, 1
          %s1182 = scalar_lea.sflag [#allocation4], %s1181
          %s1183 = sand.u32 %s171, 1
          %s1184 = smul.addr %s1183, 16
          %s1185 = scalar_lea.vmem [#allocation5], %s1184
          %1186 = dma.done %s1182, 256
        $region60: #{tpu_custom_call.1} parent=55 // pred_fallthru
          _
      $region56: #{tpu_custom_call.1} parent=5 // pred_fallthru
        _
    $region6: #{tpu_custom_call.1} parent=1 // loop_footer
      %s19 = sadd.s32 1, %s15
    $region7: #{tpu_custom_call.1} parent=1 // loop_footer_branch
      %14 = sbr.rel target = $region3
    $region8: #{tpu_custom_call.1} parent=1 // loop_exit
      _
    %1187 = vsyncpa [#allocation3], 1
    %s1188 = scalar_lea.sflag [#allocation3], 1
    %1189 = vsyncpa %s1188, 1
    %1190 = vsyncpa [#allocation4], 1
    %s1191 = scalar_lea.sflag [#allocation4], 1
    %1192 = vsyncpa %s1191, 1

</llo_original>
